<compile_context>
chip_gen: v5e
topology: v5e:2x2
jax: 0.10.0
libtpu: 0.0.40
codegen_flags: <defaults>
</compile_context>

<pallas_src>
import functools

import jax
import jax.numpy as jnp
from jax.experimental import pallas as pl
from jax.experimental.pallas import tpu as pltpu

# ----------------------------- problem sizes --------------------------------
B = 8            # batch (padded to a multiple of TB inside the wrapper)
OBS_DIM = 8      # flattened obs_data features per batch element
NOISE_DIM = 16
HIDDEN = 32
T = 8            # trajectory length
IN_DIM = OBS_DIM + NOISE_DIM
OUT_DIM = 2 * T
TB = 8           # batch tile (f32 sublane count)

# STL constants from __init__
C1 = (25.0, 25.0); R1 = 5.0
C2 = (25.0, 15.0); R2 = 5.0
X_LOW, X_HIGH = 5.0, 45.0
Y_LOW, Y_HIGH = 5.0, 45.0


# ------------------------------- kernel -------------------------------------
def _bool_stl_kernel(obs_ref, noise_ref, w1o_ref, w1n_ref, b1_ref,
                     w2x_ref, w2y_ref, b2x_ref, b2y_ref, out_ref, *,
                     sx, ox, sy, oy):
    # ---- generator: tanh(relu([obs, noise] @ W1 + b1) @ W2 + b2) ----
    # bf16 operands on the MXU, f32 accumulation.  Pre-split W1 replaces the
    # wrapper-side concat; pre-split W2 keeps x/y in separate arrays so no
    # sub-128 lane slicing is needed downstream.
    obs = obs_ref[...].astype(jnp.bfloat16)
    noi = noise_ref[...].astype(jnp.bfloat16)
    h = (jnp.dot(obs, w1o_ref[...], preferred_element_type=jnp.float32)
         + jnp.dot(noi, w1n_ref[...], preferred_element_type=jnp.float32)
         + b1_ref[...])
    h = jnp.maximum(h, 0.0).astype(jnp.bfloat16)                       # ReLU
    gx = jnp.tanh(jnp.dot(h, w2x_ref[...], preferred_element_type=jnp.float32)
                  + b2x_ref[...])                                      # [TB, T]
    gy = jnp.tanh(jnp.dot(h, w2y_ref[...], preferred_element_type=jnp.float32)
                  + b2y_ref[...])                                      # [TB, T]

    # ---- rescale (mins/maxs folded into compile-time scale/offset) ----
    rx = gx * sx + ox
    ry = gy * sy + oy

    # ---- boolean STL, collapsed: 1.0 iff every margin > 0 for every t ----
    m = jnp.minimum(jnp.minimum(rx - X_LOW, X_HIGH - rx),
                    jnp.minimum(ry - Y_LOW, Y_HIGH - ry))
    d1 = (rx - C1[0]) ** 2 + (ry - C1[1]) ** 2      # squared distances: no sqrt,
    d2 = (rx - C2[0]) ** 2 + (ry - C2[1]) ** 2      # compare against R^2 instead
    m = jnp.minimum(m, jnp.minimum(d1 - R1 * R1, d2 - R2 * R2))        # [TB, T]

    m_min = jnp.min(m, axis=1, keepdims=True)                          # [TB, 1]
    # NOTE: for large batches a lane-dense [1, TB] / [TB, 128] output layout
    # avoids masked partial stores; at TB=8 a [TB, 1] store is negligible.
    out_ref[...] = jnp.where(m_min > 0.0, 1.0, 0.0).astype(jnp.float32)


# ------------------------------- wrapper -------------------------------------
def prepare_generator_params(w1, b1, w2, b2):
    """One-time host-side prep: split + cast the generator weights.

    Splitting W1 by input block removes the per-call [obs, noise] concat;
    splitting W2/b2 by output channel removes in-kernel lane slicing; bf16
    weights feed the MXU natively on all TPU generations.
    """
    w1o = w1[:OBS_DIM].astype(jnp.bfloat16)       # [OBS_DIM,   HIDDEN]
    w1n = w1[OBS_DIM:].astype(jnp.bfloat16)       # [NOISE_DIM, HIDDEN]
    w2x = w2[:, :T].astype(jnp.bfloat16)          # [HIDDEN, T]   (x channel)
    w2y = w2[:, T:].astype(jnp.bfloat16)          # [HIDDEN, T]   (y channel)
    b1f = b1.astype(jnp.float32)                  # [1, HIDDEN]
    b2x = b2[:, :T].astype(jnp.float32)           # [1, T]
    b2y = b2[:, T:].astype(jnp.float32)           # [1, T]
    return w1o, w1n, b1f, w2x, w2y, b2x, b2y


def cond_gen_bool_stl_maze(obs_data, noise, params, mins, maxs):
    """Boolean STL evaluation, shape [B], values in {0.0, 1.0}."""
    w1o, w1n, b1f, w2x, w2y, b2x, b2y = params

    # mins/maxs are construction-time constants in the module -> fold them
    # into per-channel compile-time scale/offset:  r = g * s + o.
    sx = (float(maxs[0]) - float(mins[0])) * 0.5
    sy = (float(maxs[1]) - float(mins[1])) * 0.5
    ox = float(mins[0]) + sx
    oy = float(mins[1]) + sy

    bn = obs_data.shape[0]
    pad = (-bn) % TB
    if pad:  # pad batch up to a multiple of the 8-row sublane tile
        obs_data = jnp.pad(obs_data, ((0, pad), (0, 0)))
        noise = jnp.pad(noise, ((0, pad), (0, 0)))
    bp = bn + pad
    n_tiles = bp // TB

    kernel = functools.partial(_bool_stl_kernel, sx=sx, ox=ox, sy=sy, oy=oy)
    full = lambda i: (0, 0)
    tile = lambda i: (i, 0)
    out = pl.pallas_call(
        kernel,
        out_shape=jax.ShapeDtypeStruct((bp, 1), jnp.float32),
        grid=(n_tiles,),
        in_specs=[
            pl.BlockSpec((TB, OBS_DIM), tile),        # obs tile
            pl.BlockSpec((TB, NOISE_DIM), tile),      # noise tile
            pl.BlockSpec((OBS_DIM, HIDDEN), full),    # W1 (obs half)
            pl.BlockSpec((NOISE_DIM, HIDDEN), full),  # W1 (noise half)
            pl.BlockSpec((1, HIDDEN), full),          # b1
            pl.BlockSpec((HIDDEN, T), full),          # W2 (x half)
            pl.BlockSpec((HIDDEN, T), full),          # W2 (y half)
            pl.BlockSpec((1, T), full),               # b2 (x half)
            pl.BlockSpec((1, T), full),               # b2 (y half)
        ],
        out_specs=pl.BlockSpec((TB, 1), tile),
        compiler_params=pltpu.CompilerParams(
            dimension_semantics=("parallel",)),       # shard B-tiles across TCs
    )(obs_data.astype(jnp.float32), noise.astype(jnp.float32),
      w1o, w1n, b1f, w2x, w2y, b2x, b2y)
    return out[:bn, 0]


# --------------------------- pure-JAX reference ------------------------------
def _reference(obs_data, noise, w1, b1, w2, b2, mins, maxs):
    """Faithful sign(relu)/sqrt STL formulation on the same bf16 generator."""
    obs_b = obs_data.astype(jnp.bfloat16)
    noi_b = noise.astype(jnp.bfloat16)
    w1_b = w1.astype(jnp.bfloat16)
    w2_b = w2.astype(jnp.bfloat16)
    # [obs, noise] @ W1 == obs @ W1[:OBS_DIM] + noise @ W1[OBS_DIM:]
    h = (jnp.dot(obs_b, w1_b[:OBS_DIM], preferred_element_type=jnp.float32)
         + jnp.dot(noi_b, w1_b[OBS_DIM:], preferred_element_type=jnp.float32) + b1)
    h = jnp.maximum(h, 0.0).astype(jnp.bfloat16)
    g = jnp.tanh(jnp.dot(h, w2_b, preferred_element_type=jnp.float32) + b2)  # [B, 2T]
    sig = g.reshape(g.shape[0], 2, T)                                        # [B, 2, T]
    mn = mins.reshape(1, 2, 1)
    mx = maxs.reshape(1, 2, 1)
    r = mn + (sig + 1.0) * (mx - mn) / 2.0
    rx, ry = r[:, 0, :], r[:, 1, :]
    bval = lambda margin: jnp.sign(jnp.maximum(margin, 0.0))
    atoms = [
        bval(rx - X_LOW), bval(X_HIGH - rx),
        bval(ry - Y_LOW), bval(Y_HIGH - ry),
        bval(jnp.sqrt((rx - C1[0]) ** 2 + (ry - C1[1]) ** 2) - R1),
        bval(jnp.sqrt((rx - C2[0]) ** 2 + (ry - C2[1]) ** 2) - R2),
    ]
    and_all = atoms[0]
    for a in atoms[1:]:
        and_all = jnp.minimum(and_all, a)
    return jnp.min(and_all, axis=1)   # [B]


# --------------------------------- main --------------------------------------
if __name__ == "__main__":
    key = jax.random.PRNGKey(0)
    k_obs, k_noise, k_w1, k_b1, k_w2, k_b2 = jax.random.split(key, 6)

    obs_data = jax.random.normal(k_obs, (B, OBS_DIM), dtype=jnp.float32)
    noise = jax.random.normal(k_noise, (B, NOISE_DIM), dtype=jnp.float32)

    # deterministic synthetic generator weights
    w1 = 0.3 * jax.random.normal(k_w1, (IN_DIM, HIDDEN), dtype=jnp.float32)
    b1 = 0.1 * jax.random.normal(k_b1, (1, HIDDEN), dtype=jnp.float32)
    w2 = 0.3 * jax.random.normal(k_w2, (HIDDEN, OUT_DIM), dtype=jnp.float32)
    b2 = 0.1 * jax.random.normal(k_b2, (1, OUT_DIM), dtype=jnp.float32)

    # MAXES / MINS per coordinate channel, as in the maze setup
    mins = jnp.array([0.0, 0.0], dtype=jnp.float32)
    maxs = jnp.array([50.0, 50.0], dtype=jnp.float32)

    params = prepare_generator_params(w1, b1, w2, b2)
    out = cond_gen_bool_stl_maze(obs_data, noise, params, mins, maxs)
    out = jax.block_until_ready(out)

    ref = _reference(obs_data, noise, w1, b1, w2, b2, mins, maxs)
    assert out.shape == (B,), out.shape
    assert jnp.allclose(out, ref, atol=1e-5), (out, ref)

    print("KERNEL_OK")
</pallas_src>

<mosaic_0001>
module attributes {stable_mosaic.version = 11 : i64} {
  func.func @_bool_stl_kernel(%arg0: i32, %arg1: memref<8x8xf32, #tpu.memory_space<vmem>>, %arg2: memref<8x16xf32, #tpu.memory_space<vmem>>, %arg3: memref<8x32xbf16, #tpu.memory_space<vmem>>, %arg4: memref<16x32xbf16, #tpu.memory_space<vmem>>, %arg5: memref<1x32xf32, #tpu.memory_space<vmem>>, %arg6: memref<32x8xbf16, #tpu.memory_space<vmem>>, %arg7: memref<32x8xbf16, #tpu.memory_space<vmem>>, %arg8: memref<1x8xf32, #tpu.memory_space<vmem>>, %arg9: memref<1x8xf32, #tpu.memory_space<vmem>>, %arg10: memref<8x1xf32, #tpu.memory_space<vmem>>) attributes {dimension_semantics = [#tpu.dimension_semantics<parallel>], iteration_bounds = array<i64: 1>, scalar_prefetch = 0 : i64, scratch_operands = 0 : i64, tpu.core_type = #tpu.core_type<tc>, window_params = [{transform_indices = @transform_0, window_bounds = array<i64: 8, 8>}, {transform_indices = @transform_1, window_bounds = array<i64: 8, 16>}, {pipeline_mode = #tpu.pipeline_mode<synchronous>, transform_indices = @transform_2, window_bounds = array<i64: 8, 32>}, {pipeline_mode = #tpu.pipeline_mode<synchronous>, transform_indices = @transform_3, window_bounds = array<i64: 16, 32>}, {pipeline_mode = #tpu.pipeline_mode<synchronous>, transform_indices = @transform_4, window_bounds = array<i64: 1, 32>}, {pipeline_mode = #tpu.pipeline_mode<synchronous>, transform_indices = @transform_5, window_bounds = array<i64: 32, 8>}, {pipeline_mode = #tpu.pipeline_mode<synchronous>, transform_indices = @transform_6, window_bounds = array<i64: 32, 8>}, {pipeline_mode = #tpu.pipeline_mode<synchronous>, transform_indices = @transform_7, window_bounds = array<i64: 1, 8>}, {pipeline_mode = #tpu.pipeline_mode<synchronous>, transform_indices = @transform_8, window_bounds = array<i64: 1, 8>}, {transform_indices = @transform_9, window_bounds = array<i64: 8, 1>}]} {
    %c0 = arith.constant 0 : index
    %c0_0 = arith.constant 0 : index
    %0 = vector.load %arg1[%c0, %c0_0] : memref<8x8xf32, #tpu.memory_space<vmem>>, vector<8x8xf32>
    %1 = arith.truncf %0 : vector<8x8xf32> to vector<8x8xbf16>
    %c0_1 = arith.constant 0 : index
    %c0_2 = arith.constant 0 : index
    %2 = vector.load %arg2[%c0_1, %c0_2] : memref<8x16xf32, #tpu.memory_space<vmem>>, vector<8x16xf32>
    %3 = arith.truncf %2 : vector<8x16xf32> to vector<8x16xbf16>
    %c0_3 = arith.constant 0 : index
    %c0_4 = arith.constant 0 : index
    %4 = vector.load %arg3[%c0_3, %c0_4] : memref<8x32xbf16, #tpu.memory_space<vmem>>, vector<8x32xbf16>
    %cst = arith.constant dense<0.000000e+00> : vector<8x32xf32>
    %5 = tpu.matmul %1, %4, %cst {dimension_numbers = #tpu.dot_dimension_numbers<[1], [0], [0], [1], [0, 0, 1, 1], [], []>} : vector<8x8xbf16>, vector<8x32xbf16>, vector<8x32xf32> -> vector<8x32xf32>
    %c0_5 = arith.constant 0 : index
    %c0_6 = arith.constant 0 : index
    %6 = vector.load %arg4[%c0_5, %c0_6] : memref<16x32xbf16, #tpu.memory_space<vmem>>, vector<16x32xbf16>
    %cst_7 = arith.constant dense<0.000000e+00> : vector<8x32xf32>
    %7 = tpu.matmul %3, %6, %cst_7 {dimension_numbers = #tpu.dot_dimension_numbers<[1], [0], [0], [1], [0, 0, 1, 1], [], []>} : vector<8x16xbf16>, vector<16x32xbf16>, vector<8x32xf32> -> vector<8x32xf32>
    %8 = arith.addf %5, %7 : vector<8x32xf32>
    %c0_8 = arith.constant 0 : index
    %c0_9 = arith.constant 0 : index
    %9 = vector.load %arg5[%c0_8, %c0_9] : memref<1x32xf32, #tpu.memory_space<vmem>>, vector<1x32xf32>
    %10 = vector.broadcast %9 : vector<1x32xf32> to vector<8x32xf32>
    %11 = arith.addf %8, %10 : vector<8x32xf32>
    %cst_10 = arith.constant 0.000000e+00 : f32
    %12 = vector.broadcast %cst_10 : f32 to vector<8x32xf32>
    %13 = arith.maximumf %11, %12 : vector<8x32xf32>
    %14 = arith.truncf %13 : vector<8x32xf32> to vector<8x32xbf16>
    %c0_11 = arith.constant 0 : index
    %c0_12 = arith.constant 0 : index
    %15 = vector.load %arg6[%c0_11, %c0_12] : memref<32x8xbf16, #tpu.memory_space<vmem>>, vector<32x8xbf16>
    %cst_13 = arith.constant dense<0.000000e+00> : vector<8x8xf32>
    %16 = tpu.matmul %14, %15, %cst_13 {dimension_numbers = #tpu.dot_dimension_numbers<[1], [0], [0], [1], [0, 0, 1, 1], [], []>} : vector<8x32xbf16>, vector<32x8xbf16>, vector<8x8xf32> -> vector<8x8xf32>
    %c0_14 = arith.constant 0 : index
    %c0_15 = arith.constant 0 : index
    %17 = vector.load %arg8[%c0_14, %c0_15] : memref<1x8xf32, #tpu.memory_space<vmem>>, vector<1x8xf32>
    %18 = vector.broadcast %17 : vector<1x8xf32> to vector<8x8xf32>
    %19 = arith.addf %16, %18 : vector<8x8xf32>
    %20 = math.tanh %19 : vector<8x8xf32>
    %c0_16 = arith.constant 0 : index
    %c0_17 = arith.constant 0 : index
    %21 = vector.load %arg7[%c0_16, %c0_17] : memref<32x8xbf16, #tpu.memory_space<vmem>>, vector<32x8xbf16>
    %cst_18 = arith.constant dense<0.000000e+00> : vector<8x8xf32>
    %22 = tpu.matmul %14, %21, %cst_18 {dimension_numbers = #tpu.dot_dimension_numbers<[1], [0], [0], [1], [0, 0, 1, 1], [], []>} : vector<8x32xbf16>, vector<32x8xbf16>, vector<8x8xf32> -> vector<8x8xf32>
    %c0_19 = arith.constant 0 : index
    %c0_20 = arith.constant 0 : index
    %23 = vector.load %arg9[%c0_19, %c0_20] : memref<1x8xf32, #tpu.memory_space<vmem>>, vector<1x8xf32>
    %24 = vector.broadcast %23 : vector<1x8xf32> to vector<8x8xf32>
    %25 = arith.addf %22, %24 : vector<8x8xf32>
    %26 = math.tanh %25 : vector<8x8xf32>
    %cst_21 = arith.constant 2.500000e+01 : f32
    %27 = vector.broadcast %cst_21 : f32 to vector<8x8xf32>
    %28 = arith.mulf %20, %27 : vector<8x8xf32>
    %cst_22 = arith.constant 2.500000e+01 : f32
    %29 = vector.broadcast %cst_22 : f32 to vector<8x8xf32>
    %30 = arith.addf %28, %29 : vector<8x8xf32>
    %cst_23 = arith.constant 2.500000e+01 : f32
    %31 = vector.broadcast %cst_23 : f32 to vector<8x8xf32>
    %32 = arith.mulf %26, %31 : vector<8x8xf32>
    %cst_24 = arith.constant 2.500000e+01 : f32
    %33 = vector.broadcast %cst_24 : f32 to vector<8x8xf32>
    %34 = arith.addf %32, %33 : vector<8x8xf32>
    %cst_25 = arith.constant 5.000000e+00 : f32
    %35 = vector.broadcast %cst_25 : f32 to vector<8x8xf32>
    %36 = arith.subf %30, %35 : vector<8x8xf32>
    %cst_26 = arith.constant 4.500000e+01 : f32
    %37 = vector.broadcast %cst_26 : f32 to vector<8x8xf32>
    %38 = arith.subf %37, %30 : vector<8x8xf32>
    %39 = arith.minimumf %36, %38 : vector<8x8xf32>
    %cst_27 = arith.constant 5.000000e+00 : f32
    %40 = vector.broadcast %cst_27 : f32 to vector<8x8xf32>
    %41 = arith.subf %34, %40 : vector<8x8xf32>
    %cst_28 = arith.constant 4.500000e+01 : f32
    %42 = vector.broadcast %cst_28 : f32 to vector<8x8xf32>
    %43 = arith.subf %42, %34 : vector<8x8xf32>
    %44 = arith.minimumf %41, %43 : vector<8x8xf32>
    %45 = arith.minimumf %39, %44 : vector<8x8xf32>
    %cst_29 = arith.constant 2.500000e+01 : f32
    %46 = vector.broadcast %cst_29 : f32 to vector<8x8xf32>
    %47 = arith.subf %30, %46 : vector<8x8xf32>
    %48 = arith.mulf %47, %47 : vector<8x8xf32>
    %cst_30 = arith.constant 2.500000e+01 : f32
    %49 = vector.broadcast %cst_30 : f32 to vector<8x8xf32>
    %50 = arith.subf %34, %49 : vector<8x8xf32>
    %51 = arith.mulf %50, %50 : vector<8x8xf32>
    %52 = arith.addf %48, %51 : vector<8x8xf32>
    %cst_31 = arith.constant 2.500000e+01 : f32
    %53 = vector.broadcast %cst_31 : f32 to vector<8x8xf32>
    %54 = arith.subf %30, %53 : vector<8x8xf32>
    %55 = arith.mulf %54, %54 : vector<8x8xf32>
    %cst_32 = arith.constant 1.500000e+01 : f32
    %56 = vector.broadcast %cst_32 : f32 to vector<8x8xf32>
    %57 = arith.subf %34, %56 : vector<8x8xf32>
    %58 = arith.mulf %57, %57 : vector<8x8xf32>
    %59 = arith.addf %55, %58 : vector<8x8xf32>
    %cst_33 = arith.constant 2.500000e+01 : f32
    %60 = vector.broadcast %cst_33 : f32 to vector<8x8xf32>
    %61 = arith.subf %52, %60 : vector<8x8xf32>
    %cst_34 = arith.constant 2.500000e+01 : f32
    %62 = vector.broadcast %cst_34 : f32 to vector<8x8xf32>
    %63 = arith.subf %59, %62 : vector<8x8xf32>
    %64 = arith.minimumf %61, %63 : vector<8x8xf32>
    %65 = arith.minimumf %45, %64 : vector<8x8xf32>
    %cst_35 = arith.constant dense<0x7F800000> : vector<8xf32>
    %66 = vector.multi_reduction <minimumf>, %65, %cst_35 [1] : vector<8x8xf32> to vector<8xf32>
    %67 = vector.shape_cast %66 : vector<8xf32> to vector<8x1xf32>
    %cst_36 = arith.constant 0.000000e+00 : f32
    %68 = vector.broadcast %cst_36 : f32 to vector<8x1xf32>
    %69 = arith.cmpf ogt, %67, %68 : vector<8x1xf32>
    %cst_37 = arith.constant 1.000000e+00 : f32
    %cst_38 = arith.constant 0.000000e+00 : f32
    %70 = vector.broadcast %cst_37 : f32 to vector<8x1xf32>
    %71 = vector.broadcast %cst_38 : f32 to vector<8x1xf32>
    %72 = arith.select %69, %70, %71 : vector<8x1xi1>, vector<8x1xf32>
    %c0_39 = arith.constant 0 : index
    %c0_40 = arith.constant 0 : index
    %73 = vector.load %arg10[%c0_39, %c0_40] : memref<8x1xf32, #tpu.memory_space<vmem>>, vector<8x1xf32>
    tpu.vector_store %arg10[%c0_39, %c0_40], %72 {strides = array<i32>} : memref<8x1xf32, #tpu.memory_space<vmem>>, vector<8x1xf32>,
    return
  }
  func.func @transform_0(%arg0: i32) -> (i32, i32) {
    %c0_i32 = arith.constant 0 : i32
    %c0_i32_0 = arith.constant 0 : i32
    return %arg0, %c0_i32 : i32, i32
  }
  func.func @transform_1(%arg0: i32) -> (i32, i32) {
    %c0_i32 = arith.constant 0 : i32
    %c0_i32_0 = arith.constant 0 : i32
    return %arg0, %c0_i32 : i32, i32
  }
  func.func @transform_2(%arg0: i32) -> (i32, i32) {
    %c0_i32 = arith.constant 0 : i32
    %c0_i32_0 = arith.constant 0 : i32
    %c0_i32_1 = arith.constant 0 : i32
    return %c0_i32, %c0_i32_0 : i32, i32
  }
  func.func @transform_3(%arg0: i32) -> (i32, i32) {
    %c0_i32 = arith.constant 0 : i32
    %c0_i32_0 = arith.constant 0 : i32
    %c0_i32_1 = arith.constant 0 : i32
    return %c0_i32, %c0_i32_0 : i32, i32
  }
  func.func @transform_4(%arg0: i32) -> (i32, i32) {
    %c0_i32 = arith.constant 0 : i32
    %c0_i32_0 = arith.constant 0 : i32
    %c0_i32_1 = arith.constant 0 : i32
    return %c0_i32, %c0_i32_0 : i32, i32
  }
  func.func @transform_5(%arg0: i32) -> (i32, i32) {
    %c0_i32 = arith.constant 0 : i32
    %c0_i32_0 = arith.constant 0 : i32
    %c0_i32_1 = arith.constant 0 : i32
    return %c0_i32, %c0_i32_0 : i32, i32
  }
  func.func @transform_6(%arg0: i32) -> (i32, i32) {
    %c0_i32 = arith.constant 0 : i32
    %c0_i32_0 = arith.constant 0 : i32
    %c0_i32_1 = arith.constant 0 : i32
    return %c0_i32, %c0_i32_0 : i32, i32
  }
  func.func @transform_7(%arg0: i32) -> (i32, i32) {
    %c0_i32 = arith.constant 0 : i32
    %c0_i32_0 = arith.constant 0 : i32
    %c0_i32_1 = arith.constant 0 : i32
    return %c0_i32, %c0_i32_0 : i32, i32
  }
  func.func @transform_8(%arg0: i32) -> (i32, i32) {
    %c0_i32 = arith.constant 0 : i32
    %c0_i32_0 = arith.constant 0 : i32
    %c0_i32_1 = arith.constant 0 : i32
    return %c0_i32, %c0_i32_0 : i32, i32
  }
  func.func @transform_9(%arg0: i32) -> (i32, i32) {
    %c0_i32 = arith.constant 0 : i32
    %c0_i32_0 = arith.constant 0 : i32
    return %arg0, %c0_i32 : i32, i32
  }
}

</mosaic_0001>

<llo_original>
// kernel: tpu_custom_call.1
$region0: #{tpu_custom_call.1}
  #allocation0 [shape = 'u32[]', space=smem, size = 0x4, offset = 0x4, fixed_abs, tag = 'smem constant byte address 0x4 - core index']
  #allocation1 [shape = 'u32[72,128]{1,0:T(1,128)}', space=vmem, size = 0x9000, scoped, tag = 'internal scratch']
  %s0 = inlined_call_operand.vmem [shape: f32[8,8], index: 0, kind: input, shape index: {}]
  %s1 = inlined_call_operand.vmem [shape: f32[8,16], index: 1, kind: input, shape index: {}]
  %s2 = inlined_call_operand.vmem [shape: bf16[8,32], index: 2, kind: input, shape index: {}]
  %s3 = inlined_call_operand.vmem [shape: bf16[16,32], index: 3, kind: input, shape index: {}]
  %s4 = inlined_call_operand.vmem [shape: f32[1,32], index: 4, kind: input, shape index: {}]
  %s5 = inlined_call_operand.vmem [shape: bf16[32,8], index: 5, kind: input, shape index: {}]
  %s6 = inlined_call_operand.vmem [shape: bf16[32,8], index: 6, kind: input, shape index: {}]
  %s7 = inlined_call_operand.vmem [shape: f32[1,8], index: 7, kind: input, shape index: {}]
  %s8 = inlined_call_operand.vmem [shape: f32[1,8], index: 8, kind: input, shape index: {}]
  %s9 = inlined_call_operand.vmem [shape: f32[8,1], index: 9, kind: output, shape index: {}]
  %s10 = sld [smem:[#allocation0]]
  $region46: #{tpu_custom_call.1} parent=0
    _
  %s12 = ssub.s32 1, %s10
  %s13 = scalar_select 0, %s12, %s10
  // Predicated region
  $region2: #{tpu_custom_call.1} parent=0 // pred_check
    _
  $region3: #{tpu_custom_call.1} parent=0 // pred_check_branch
    %15 = sbr.rel (0) target = $region5
  $region4: #{tpu_custom_call.1} parent=0 // pred_region
    _
  $region5: #{tpu_custom_call.1} parent=0 // pred_fallthru
    _
  // Predicated region
  $region6: #{tpu_custom_call.1} parent=0 // pred_check
    _
  $region7: #{tpu_custom_call.1} parent=0 // pred_check_branch
    %17 = sbr.rel (0) target = $region9
  $region8: #{tpu_custom_call.1} parent=0 // pred_region
    _
  $region9: #{tpu_custom_call.1} parent=0 // pred_fallthru
    _
  // Predicated region
  $region10: #{tpu_custom_call.1} parent=0 // pred_check
    _
  $region11: #{tpu_custom_call.1} parent=0 // pred_check_branch
    %19 = sbr.rel (0) target = $region13
  $region12: #{tpu_custom_call.1} parent=0 // pred_region
    _
  $region13: #{tpu_custom_call.1} parent=0 // pred_fallthru
    _
  // Predicated region
  $region14: #{tpu_custom_call.1} parent=0 // pred_check
    _
  $region15: #{tpu_custom_call.1} parent=0 // pred_check_branch
    %21 = sbr.rel (0) target = $region17
  $region16: #{tpu_custom_call.1} parent=0 // pred_region
    _
  $region17: #{tpu_custom_call.1} parent=0 // pred_fallthru
    _
  // Predicated region
  $region18: #{tpu_custom_call.1} parent=0 // pred_check
    _
  $region19: #{tpu_custom_call.1} parent=0 // pred_check_branch
    %23 = sbr.rel (0) target = $region21
  $region20: #{tpu_custom_call.1} parent=0 // pred_region
    _
  $region21: #{tpu_custom_call.1} parent=0 // pred_fallthru
    _
  // Predicated region
  $region22: #{tpu_custom_call.1} parent=0 // pred_check
    _
  $region23: #{tpu_custom_call.1} parent=0 // pred_check_branch
    %25 = sbr.rel (0) target = $region25
  $region24: #{tpu_custom_call.1} parent=0 // pred_region
    _
  $region25: #{tpu_custom_call.1} parent=0 // pred_fallthru
    _
  // Predicated region
  $region26: #{tpu_custom_call.1} parent=0 // pred_check
    _
  $region27: #{tpu_custom_call.1} parent=0 // pred_check_branch
    %27 = sbr.rel (0) target = $region29
  $region28: #{tpu_custom_call.1} parent=0 // pred_region
    _
  $region29: #{tpu_custom_call.1} parent=0 // pred_fallthru
    _
  // Predicated region
  $region30: #{tpu_custom_call.1} parent=0 // pred_check
    _
  $region31: #{tpu_custom_call.1} parent=0 // pred_check_branch
    %29 = sbr.rel (0) target = $region33
  $region32: #{tpu_custom_call.1} parent=0 // pred_region
    _
  $region33: #{tpu_custom_call.1} parent=0 // pred_fallthru
    _
  // Predicated region
  $region34: #{tpu_custom_call.1} parent=0 // pred_check
    _
  $region35: #{tpu_custom_call.1} parent=0 // pred_check_branch
    %31 = sbr.rel (0) target = $region37
  $region36: #{tpu_custom_call.1} parent=0 // pred_region
    _
  $region37: #{tpu_custom_call.1} parent=0 // pred_fallthru
    _
  %v33 = vld [vmem:[%s0] sm:$0xff]
  %v34 = vpack.c.bf16 %v33, %v33
  %v35 = vld [vmem:[%s1] sm:$0xff]
  %v36 = vpack.c.bf16 %v35, %v35
  %v37 = vld [vmem:[%s2] sm:$0xf]
  %v38 = vld [vmem:[%s3] sm:$0xf]
  %v39 = vld [vmem:[%s3 + $0x4] sm:$0xf]
  %v42 = vunpack.c.l.b16 %v38
  %v43 = vunpack.c.l.b16 %v39
  %v44 = vpack.c.b16 %v43, %v42
  %vm46 = vcmask 130048
  %v48 = vsel %vm46, %v36, 0
  %50 = vmatpush.bf16.msra.mxu0 0
  %51 = vmatpush.bf16.msra.mxu0 0
  %52 = vmatpush.bf16.msra.mxu0 0
  %53 = vmatpush.bf16.msra.mxu0 0
  %54 = vmatpush.bf16.msra.mxu0 0
  %55 = vmatpush.bf16.msra.mxu0 0
  %56 = vmatpush.bf16.msra.mxu0 0
  %57 = vmatpush.bf16.msra.mxu0 %v44
  %58 = vmatmul.bf16.gmra.mxu0 %v48
  %v59 = vpop.f32.mrf.mxu0
  %v60 = vadd.f32 0.0, %v59
  %v61 = vpop.f32.mrf.mxu0
  %62 = vdwg.mxu0
  %vm63 = vcmask 64512
  %v65 = vsel %vm63, %v34, 0
  %vm67 = vcmask 1043456
  %v69 = vsel %vm67, %v37, 0
  %71 = vmatpush.bf16.msra.mxu0 0
  %72 = vmatpush.bf16.msra.mxu0 0
  %73 = vmatpush.bf16.msra.mxu0 0
  %74 = vmatpush.bf16.msra.mxu0 0
  %75 = vmatpush.bf16.msra.mxu0 0
  %76 = vmatpush.bf16.msra.mxu0 0
  %77 = vmatpush.bf16.msra.mxu0 0
  %78 = vmatpush.bf16.msra.mxu0 %v69
  %79 = vmatmul.bf16.gmra.mxu0 %v65
  %v80 = vpop.f32.mrf.mxu0
  %v81 = vadd.f32 %v60, %v80
  %v82 = vpop.f32.mrf.mxu0
  %83 = vdwg.mxu0
  %v84 = vld [vmem:[%s4] sm:$0x1]
  %v86 = vperm.slane %v84, 0
  %v88 = vadd.f32 %v81, %v86
  %v89 = vmax.f32 %v88, 0.0
  %v90 = vpack.c.bf16 %v89, %v89
  %v91 = vld [vmem:[%s5] sm:$0xf]
  %v92 = vld [vmem:[%s5 + $0x4] sm:$0xf]
  %v93 = vld [vmem:[%s5 + $0x8] sm:$0xf]
  %v94 = vld [vmem:[%s5 + $0xc] sm:$0xf]
  %v95 = vld [vmem:[%s7] sm:$0x1]
  %v97 = vperm.slane %v95, 0
  %v103 = vunpack.c.l.b16 %v91
  %v104 = vunpack.c.l.b16 %v92
  %v105 = vunpack.c.l.b16 %v93
  %v106 = vunpack.c.l.b16 %v94
  %v107 = vpack.c.b16 %v104, %v103
  %v108 = vpack.c.b16 %v106, %v105
  %vm111 = vcmask 261120
  %v113 = vsel %vm111, %v90, 0
  %115 = vmatpush.bf16.msra.mxu0 0
  %116 = vmatpush.bf16.msra.mxu0 0
  %117 = vmatpush.bf16.msra.mxu0 0
  %118 = vmatpush.bf16.msra.mxu0 0
  %119 = vmatpush.bf16.msra.mxu0 0
  %120 = vmatpush.bf16.msra.mxu0 0
  %121 = vmatpush.bf16.msra.mxu0 %v108
  %122 = vmatpush.bf16.msra.mxu0 %v107
  %123 = vmatmul.bf16.gmra.mxu0 %v113
  %v124 = vpop.f32.mrf.mxu0
  %v125 = vadd.f32 %v97, %v124
  %v126 = vpop.f32.mrf.mxu0
  %127 = vdwg.mxu0
  %v128 = vtanh.pop %v125
  %v129 = vld [vmem:[%s6] sm:$0xf]
  %v130 = vld [vmem:[%s6 + $0x4] sm:$0xf]
  %v131 = vld [vmem:[%s6 + $0x8] sm:$0xf]
  %v132 = vld [vmem:[%s6 + $0xc] sm:$0xf]
  %v133 = vld [vmem:[%s8] sm:$0x1]
  %v135 = vperm.slane %v133, 0
  %v141 = vunpack.c.l.b16 %v129
  %v142 = vunpack.c.l.b16 %v130
  %v143 = vunpack.c.l.b16 %v131
  %v144 = vunpack.c.l.b16 %v132
  %v145 = vpack.c.b16 %v142, %v141
  %v146 = vpack.c.b16 %v144, %v143
  %149 = vmatpush.bf16.msra.mxu0 0
  %150 = vmatpush.bf16.msra.mxu0 0
  %151 = vmatpush.bf16.msra.mxu0 0
  %152 = vmatpush.bf16.msra.mxu0 0
  %153 = vmatpush.bf16.msra.mxu0 0
  %154 = vmatpush.bf16.msra.mxu0 0
  %155 = vmatpush.bf16.msra.mxu0 %v146
  %156 = vmatpush.bf16.msra.mxu0 %v145
  %157 = vmatmul.bf16.gmra.mxu0 %v113
  %v158 = vpop.f32.mrf.mxu0
  %v159 = vadd.f32 %v135, %v158
  %v160 = vpop.f32.mrf.mxu0
  %161 = vdwg.mxu0
  %v162 = vtanh.pop %v159
  %v163 = vmul.f32 %v128, 25.0
  %v164 = vadd.f32 %v163, 25.0
  %v165 = vmul.f32 %v162, 25.0
  %v166 = vadd.f32 %v165, 25.0
  %v167 = vsub.f32 %v164, 5.0
  %v168 = vsub.f32 45.0, %v164
  %v169 = vmin.f32 %v167, %v168
  %v170 = vsub.f32 %v166, 5.0
  %v171 = vsub.f32 45.0, %v166
  %v172 = vmin.f32 %v170, %v171
  %v173 = vmin.f32 %v169, %v172
  %v174 = vsub.f32 %v164, 25.0
  %v175 = vmul.f32 %v174, %v174
  %v176 = vsub.f32 %v166, 25.0
  %v177 = vmul.f32 %v176, %v176
  %v178 = vadd.f32 %v175, %v177
  %v179 = vsub.f32 %v166, 15.0
  %v180 = vmul.f32 %v179, %v179
  %v181 = vadd.f32 %v175, %v180
  %v182 = vsub.f32 %v178, 25.0
  %v183 = vsub.f32 %v181, 25.0
  %v184 = vmin.f32 %v182, %v183
  %v185 = vmin.f32 %v173, %v184
  %v186 = vsel %vm63, %v185, inf
  %187 = vmin.xlane.f32.xlu0 %v186
  %v188 = vpop.xlane.xlu0 %187
  %vm189 = vcmp.gt.f32.partialorder %v188, 0.0
  %v190 = vsel %vm189, 1.0, 0.0
  %vm191 = vcmask 7168
  %192 = vst.msk [vmem:[%s9] sm:$0xff] %vm191, %v190
  // Predicated region
  $region38: #{tpu_custom_call.1} parent=0 // pred_check
    _
  $region39: #{tpu_custom_call.1} parent=0 // pred_check_branch
    %194 = sbr.rel (0) target = $region41
  $region40: #{tpu_custom_call.1} parent=0 // pred_region
    _
  $region41: #{tpu_custom_call.1} parent=0 // pred_fallthru
    _
  // Predicated region
  $region42: #{tpu_custom_call.1} parent=0 // pred_check
    _
  $region43: #{tpu_custom_call.1} parent=0 // pred_check_branch
    %196 = sbr.rel (0) target = $region45
  $region44: #{tpu_custom_call.1} parent=0 // pred_region
    _
  $region45: #{tpu_custom_call.1} parent=0 // pred_fallthru
    _

</llo_original>
